<compile_context>
chip_gen: v7x
topology: tpu7x:2x2x1
jax: 0.10.0
libtpu: 0.0.40
codegen_flags: <defaults>
</compile_context>

<pallas_src>
import math

import jax
import jax.numpy as jnp
from jax.experimental import pallas as pl
from jax.experimental.pallas import tpu as pltpu


def _round_up(n, m):
    return ((n + m - 1) // m) * m


# -----------------------------------------------------------------------------
# Fused decode kernel: attention + GRU recurrence + output fc, ALL steps.
# grid = (batch_tiles,) ; steps are an in-kernel fori_loop.
# -----------------------------------------------------------------------------
def _aster_decode_kernel(giy_ref, x_ref, xWT_ref, xb_ref, sslab_ref, sbias_ref,
                         wrow_ref, wcT_ref, fcWT_ref, fcb_ref, out_ref):
    L = giy_ref.shape[0]
    Bt, T, D = x_ref.shape
    Ap = xb_ref.shape[1]          # att_dim padded to a multiple of 128 (lane-dense)
    S = sslab_ref.shape[0]        # GRU hidden size

    x = x_ref[...]                                                     # [Bt, T, D]

    # ---- step-invariant prologue: xEmbed(x), computed once per batch tile ----
    x_proj = (jnp.dot(x.reshape(Bt * T, D), xWT_ref[...],
                      preferred_element_type=jnp.float32)
              + xb_ref[...]).reshape(Bt, T, Ap)                        # [Bt, T, Ap]

    s_slab = sslab_ref[...]       # [S, Ap + 3S] = [ sEmbed^T | W_hh^T ]
    s_bias = sbias_ref[...]       # [1, Ap + 3S] = [ sEmbed b  | b_hh   ]
    w_row = wrow_ref[...]         # [1, Ap]        wEmbed weight row
    wcT = wcT_ref[...]            # [D, 3S]        context columns of W_ih^T
    fcWT = fcWT_ref[...]          # [S, NCp]
    fcb = fcb_ref[...]            # [1, NCp]

    def step(i, h):
        # One MXU dot for both sEmbed(s_prev) and W_hh @ s_prev (shared LHS).
        s_all = jnp.dot(h, s_slab, preferred_element_type=jnp.float32) + s_bias
        s_proj = s_all[:, :Ap]            # lane-tile-aligned split (Ap % 128 == 0)
        gh = s_all[:, Ap:]                # [Bt, 3S]

        # AttentionUnit (wEmbed bias is constant over T -> softmax-invariant, dropped)
        summed = jnp.tanh(s_proj[:, None, :] + x_proj)                 # [Bt, T, Ap]
        v = jnp.sum(summed * w_row[None], axis=-1)                     # [Bt, T]
        v_max = jnp.max(v, axis=1, keepdims=True)
        e = jnp.exp(v - v_max)
        alpha = e * pl.reciprocal(jnp.sum(e, axis=1, keepdims=True), approx=True)

        # context = sum_t alpha * x : VPU multiply + cross-sublane reduce (no q=1 bmm)
        context = jnp.sum(alpha[:, :, None] * x, axis=1)               # [Bt, D]

        # Single-step GRU, PyTorch gate order (r, z, n); y-path gates were hoisted.
        gi = giy_ref[i] + jnp.dot(context, wcT, preferred_element_type=jnp.float32)
        r = jax.nn.sigmoid(gi[:, :S] + gh[:, :S])
        z = jax.nn.sigmoid(gi[:, S:2 * S] + gh[:, S:2 * S])
        n = jnp.tanh(gi[:, 2 * S:] + r * gh[:, 2 * S:])
        h_new = (1.0 - z) * n + z * h                                  # [Bt, S]

        # Output fc into the resident, lane-dense padded logits block.
        out_ref[i] = jnp.dot(h_new, fcWT, preferred_element_type=jnp.float32) + fcb
        return h_new

    # TODO(synk): for production L (~32), consider unrolling this loop for LLO
    # scheduling visibility (recurrence stays serial either way).
    jax.lax.fori_loop(0, L, step, jnp.zeros((Bt, S), jnp.float32))


# -----------------------------------------------------------------------------
# Wrapper with the semantics of AsterHead.forward (teacher forcing).
# -----------------------------------------------------------------------------
def aster_head_forward(x, targets, lengths, kp, num_classes, s_dim):
    B, T, D = x.shape
    L = int(max(lengths))
    Ap = kp['xb'].shape[1]
    NCp = kp['fcb'].shape[1]
    G3 = 3 * s_dim

    # Teacher-forced previous symbols (SOS token = num_classes at step 0).
    sos = jnp.full((B, 1), num_classes, dtype=jnp.int32)
    y_prev = jnp.concatenate([sos, targets[:, :L - 1].astype(jnp.int32)], axis=1)  # [B, L]

    # Hoisted y-path GRU gates: fold the embedding lookup with the y columns of
    # W_ih (+ b_ih) so the serial decode loop does no y-path matmul at all.
    gate_tab = jnp.dot(kp['tgt_emb'], kp['wyT'],
                       preferred_element_type=jnp.float32) + kp['bih']   # [NC+1, 3S]
    giy_all = gate_tab[y_prev.T]                                         # [L, B, 3S]

    Bt = B  # single batch tile at demo size
    # TODO(synk): at production sizes tile the batch (Bt=128/256, grid[0] >= 2 for
    # v7x megacore), cast x / weight slabs / giy to bf16 (keep state + accumulation
    # f32), and single-buffer the constant-index weight BlockSpecs
    # (pipeline_mode=pl.Buffered(1)) to stay inside v7x's 64 MiB VMEM.
    grid = (B // Bt,)

    def wspec(shape):
        return pl.BlockSpec(shape, lambda bi: (0,) * len(shape))

    out_pad = pl.pallas_call(
        _aster_decode_kernel,
        grid=grid,
        in_specs=[
            pl.BlockSpec((L, Bt, G3), lambda bi: (0, bi, 0)),   # hoisted y-path gates
            pl.BlockSpec((Bt, T, D), lambda bi: (bi, 0, 0)),    # encoder features
            wspec(kp['xWT'].shape),                             # xEmbed^T  [D, Ap]
            wspec(kp['xb'].shape),                              # xEmbed b  [1, Ap]
            wspec(kp['s_slab'].shape),                          # [sEmbed^T | W_hh^T]
            wspec(kp['s_bias'].shape),                          # [sEmbed b | b_hh]
            wspec(kp['wrow'].shape),                            # wEmbed row [1, Ap]
            wspec(kp['wcT'].shape),                             # W_ih^T ctx cols [D,3S]
            wspec(kp['fcWT'].shape),                            # fc^T padded [S, NCp]
            wspec(kp['fcb'].shape),                             # fc b padded [1, NCp]
        ],
        out_specs=pl.BlockSpec((L, Bt, NCp), lambda bi: (0, bi, 0)),
        out_shape=jax.ShapeDtypeStruct((L, B, NCp), jnp.float32),
        compiler_params=pltpu.CompilerParams(
            dimension_semantics=("parallel",),
            vmem_limit_bytes=32 * 1024 * 1024),
    )(giy_all, x, kp['xWT'], kp['xb'], kp['s_slab'], kp['s_bias'],
      kp['wrow'], kp['wcT'], kp['fcWT'], kp['fcb'])

    # [L, B, NCp] -> [B, L, NC]
    return jnp.transpose(out_pad[:, :, :num_classes], (1, 0, 2))


# -----------------------------------------------------------------------------
# Parameter init (PyTorch-equivalent) + packing into pre-transposed, padded slabs.
# -----------------------------------------------------------------------------
def init_params(key, num_classes, in_planes, s_dim, att_dim):
    emd_dim = att_dim
    ks = jax.random.split(key, 9)
    std = 0.01
    sW = std * jax.random.normal(ks[0], (att_dim, s_dim), jnp.float32)
    xW = std * jax.random.normal(ks[1], (att_dim, in_planes), jnp.float32)
    wW = std * jax.random.normal(ks[2], (1, att_dim), jnp.float32)
    tgt_emb = std * jax.random.normal(ks[3], (num_classes + 1, emd_dim), jnp.float32)
    fcW = std * jax.random.normal(ks[4], (num_classes, s_dim), jnp.float32)
    kb = 1.0 / math.sqrt(s_dim)
    # GRU input is torch.cat([yProj, context]) -> columns [0:E] multiply y_emb.
    W_ih = jax.random.uniform(ks[5], (3 * s_dim, emd_dim + in_planes), jnp.float32, -kb, kb)
    W_hh = jax.random.uniform(ks[6], (3 * s_dim, s_dim), jnp.float32, -kb, kb)
    b_ih = jax.random.uniform(ks[7], (3 * s_dim,), jnp.float32, -kb, kb)
    b_hh = jax.random.uniform(ks[8], (3 * s_dim,), jnp.float32, -kb, kb)
    sb = jnp.zeros((att_dim,), jnp.float32)
    xb = jnp.zeros((att_dim,), jnp.float32)
    wb = jnp.zeros((1,), jnp.float32)
    fcb = jnp.zeros((num_classes,), jnp.float32)

    raw = dict(sW=sW, sb=sb, xW=xW, xb=xb, wW=wW, wb=wb, tgt_emb=tgt_emb,
               W_ih=W_ih, W_hh=W_hh, b_ih=b_ih, b_hh=b_hh, fcW=fcW, fcb=fcb)

    Ap = _round_up(att_dim, 128)          # attention dim, lane-padded
    NCp = _round_up(num_classes, 128)     # logits dim, lane-padded

    def pad_cols(m, cols):
        out = jnp.zeros((m.shape[0], cols), m.dtype)
        return out.at[:, :m.shape[1]].set(m)

    kp = dict(
        xWT=pad_cols(xW.T, Ap),                                  # [D, Ap]
        xb=pad_cols(xb.reshape(1, -1), Ap),                      # [1, Ap]
        wrow=pad_cols(wW, Ap),                                   # [1, Ap]
        # merged s_prev-LHS slab + bias (128-aligned split point at Ap)
        s_slab=jnp.concatenate([pad_cols(sW.T, Ap), W_hh.T], axis=1),          # [S, Ap+3S]
        s_bias=jnp.concatenate([pad_cols(sb.reshape(1, -1), Ap),
                                b_hh.reshape(1, -1)], axis=1),                 # [1, Ap+3S]
        # W_ih split into y / context column groups, pre-transposed
        wyT=W_ih[:, :emd_dim].T,                                 # [E, 3S]
        wcT=W_ih[:, emd_dim:].T,                                 # [D, 3S]
        bih=b_ih.reshape(1, -1),                                 # [1, 3S]
        # fc, lane-dense padded
        fcWT=pad_cols(fcW.T, NCp),                               # [S, NCp]
        fcb=pad_cols(fcb.reshape(1, -1), NCp),                   # [1, NCp]
        tgt_emb=tgt_emb,
    )
    return raw, kp


# -----------------------------------------------------------------------------
# Pure-JAX reference mirroring the PyTorch module math.
# -----------------------------------------------------------------------------
def ref_forward(x, targets, lengths, raw, num_classes, s_dim):
    B, T, D = x.shape
    S = s_dim
    state = jnp.zeros((B, S), jnp.float32)
    outs = []
    for i in range(int(max(lengths))):
        if i == 0:
            y_prev = jnp.full((B,), num_classes, dtype=jnp.int32)
        else:
            y_prev = targets[:, i - 1].astype(jnp.int32)
        y_emb = raw['tgt_emb'][y_prev]
        x_proj = jnp.einsum('btd,ad->bta', x, raw['xW']) + raw['xb']
        s_proj = state @ raw['sW'].T + raw['sb']
        summed = jnp.tanh(s_proj[:, None, :] + x_proj)
        v = jnp.einsum('bta,a->bt', summed, raw['wW'][0]) + raw['wb'][0]
        alpha = jax.nn.softmax(v, axis=1)
        context = jnp.einsum('bt,btd->bd', alpha, x)
        gru_in = jnp.concatenate([y_emb, context], axis=1)
        gi = gru_in @ raw['W_ih'].T + raw['b_ih']
        gh = state @ raw['W_hh'].T + raw['b_hh']
        r = jax.nn.sigmoid(gi[:, :S] + gh[:, :S])
        z = jax.nn.sigmoid(gi[:, S:2 * S] + gh[:, S:2 * S])
        n = jnp.tanh(gi[:, 2 * S:] + r * gh[:, 2 * S:])
        state = (1.0 - z) * n + z * state
        outs.append(state @ raw['fcW'].T + raw['fcb'])
    return jnp.stack(outs, axis=1)


if __name__ == "__main__":
    # Small, module-consistent shapes.
    B, T = 2, 8              # batch, encoder sequence length
    in_planes = 32           # x_dim
    s_dim = 32               # GRU hidden
    att_dim = 32
    num_classes = 16
    max_len_labels = 5
    lengths = [5, 3]         # max(lengths) = 5 decode steps

    key = jax.random.PRNGKey(0)
    k_x, k_t, k_p = jax.random.split(key, 3)
    x = jax.random.normal(k_x, (B, T, in_planes), jnp.float32)
    targets = jax.random.randint(k_t, (B, max_len_labels), 0, num_classes, jnp.int32)

    raw, kp = init_params(k_p, num_classes, in_planes, s_dim, att_dim)

    @jax.jit
    def run(x_, targets_, kp_):
        return aster_head_forward(x_, targets_, lengths, kp_, num_classes, s_dim)

    out = jax.block_until_ready(run(x, targets, kp))

    assert out.shape == (B, max(lengths), num_classes), out.shape
    assert bool(jnp.all(jnp.isfinite(out)))

    ref = ref_forward(x, targets, lengths, raw, num_classes, s_dim)
    max_err = float(jnp.max(jnp.abs(out - ref)))
    assert jnp.allclose(out, ref, atol=1e-3, rtol=1e-2), max_err

    print("KERNEL_OK")
</pallas_src>

<mosaic_0001>
module attributes {stable_mosaic.version = 11 : i64} {
  func.func @_aster_decode_kernel(%arg0: i32, %arg1: memref<5x2x96xf32, #tpu.memory_space<vmem>>, %arg2: memref<2x8x32xf32, #tpu.memory_space<vmem>>, %arg3: memref<32x128xf32, #tpu.memory_space<vmem>>, %arg4: memref<1x128xf32, #tpu.memory_space<vmem>>, %arg5: memref<32x224xf32, #tpu.memory_space<vmem>>, %arg6: memref<1x224xf32, #tpu.memory_space<vmem>>, %arg7: memref<1x128xf32, #tpu.memory_space<vmem>>, %arg8: memref<32x96xf32, #tpu.memory_space<vmem>>, %arg9: memref<32x128xf32, #tpu.memory_space<vmem>>, %arg10: memref<1x128xf32, #tpu.memory_space<vmem>>, %arg11: memref<5x2x128xf32, #tpu.memory_space<vmem>>) attributes {dimension_semantics = [#tpu.dimension_semantics<parallel>], iteration_bounds = array<i64: 1>, scalar_prefetch = 0 : i64, scratch_operands = 0 : i64, tpu.core_type = #tpu.core_type<tc>, window_params = [{transform_indices = @transform_0, window_bounds = array<i64: 5, 2, 96>}, {transform_indices = @transform_1, window_bounds = array<i64: 2, 8, 32>}, {pipeline_mode = #tpu.pipeline_mode<synchronous>, transform_indices = @transform_2, window_bounds = array<i64: 32, 128>}, {pipeline_mode = #tpu.pipeline_mode<synchronous>, transform_indices = @transform_3, window_bounds = array<i64: 1, 128>}, {pipeline_mode = #tpu.pipeline_mode<synchronous>, transform_indices = @transform_4, window_bounds = array<i64: 32, 224>}, {pipeline_mode = #tpu.pipeline_mode<synchronous>, transform_indices = @transform_5, window_bounds = array<i64: 1, 224>}, {pipeline_mode = #tpu.pipeline_mode<synchronous>, transform_indices = @transform_6, window_bounds = array<i64: 1, 128>}, {pipeline_mode = #tpu.pipeline_mode<synchronous>, transform_indices = @transform_7, window_bounds = array<i64: 32, 96>}, {pipeline_mode = #tpu.pipeline_mode<synchronous>, transform_indices = @transform_8, window_bounds = array<i64: 32, 128>}, {pipeline_mode = #tpu.pipeline_mode<synchronous>, transform_indices = @transform_9, window_bounds = array<i64: 1, 128>}, {transform_indices = @transform_10, window_bounds = array<i64: 5, 2, 128>}]} {
    %c0 = arith.constant 0 : index
    %c0_0 = arith.constant 0 : index
    %c0_1 = arith.constant 0 : index
    %0 = vector.load %arg2[%c0, %c0_0, %c0_1] : memref<2x8x32xf32, #tpu.memory_space<vmem>>, vector<2x8x32xf32>
    %1 = vector.shape_cast %0 : vector<2x8x32xf32> to vector<16x32xf32>
    %c0_2 = arith.constant 0 : index
    %c0_3 = arith.constant 0 : index
    %2 = vector.load %arg3[%c0_2, %c0_3] : memref<32x128xf32, #tpu.memory_space<vmem>>, vector<32x128xf32>
    %cst = arith.constant dense<0.000000e+00> : vector<16x128xf32>
    %3 = tpu.matmul %1, %2, %cst {dimension_numbers = #tpu.dot_dimension_numbers<[1], [0], [0], [1], [0, 0, 1, 1], [], []>} : vector<16x32xf32>, vector<32x128xf32>, vector<16x128xf32> -> vector<16x128xf32>
    %c0_4 = arith.constant 0 : index
    %c0_5 = arith.constant 0 : index
    %4 = vector.load %arg4[%c0_4, %c0_5] : memref<1x128xf32, #tpu.memory_space<vmem>>, vector<1x128xf32>
    %5 = vector.broadcast %4 : vector<1x128xf32> to vector<16x128xf32>
    %6 = arith.addf %3, %5 : vector<16x128xf32>
    %7 = vector.shape_cast %6 : vector<16x128xf32> to vector<2x8x128xf32>
    %c0_6 = arith.constant 0 : index
    %c0_7 = arith.constant 0 : index
    %8 = vector.load %arg5[%c0_6, %c0_7] : memref<32x224xf32, #tpu.memory_space<vmem>>, vector<32x224xf32>
    %c0_8 = arith.constant 0 : index
    %c0_9 = arith.constant 0 : index
    %9 = vector.load %arg6[%c0_8, %c0_9] : memref<1x224xf32, #tpu.memory_space<vmem>>, vector<1x224xf32>
    %c0_10 = arith.constant 0 : index
    %c0_11 = arith.constant 0 : index
    %10 = vector.load %arg7[%c0_10, %c0_11] : memref<1x128xf32, #tpu.memory_space<vmem>>, vector<1x128xf32>
    %c0_12 = arith.constant 0 : index
    %c0_13 = arith.constant 0 : index
    %11 = vector.load %arg8[%c0_12, %c0_13] : memref<32x96xf32, #tpu.memory_space<vmem>>, vector<32x96xf32>
    %c0_14 = arith.constant 0 : index
    %c0_15 = arith.constant 0 : index
    %12 = vector.load %arg9[%c0_14, %c0_15] : memref<32x128xf32, #tpu.memory_space<vmem>>, vector<32x128xf32>
    %c0_16 = arith.constant 0 : index
    %c0_17 = arith.constant 0 : index
    %13 = vector.load %arg10[%c0_16, %c0_17] : memref<1x128xf32, #tpu.memory_space<vmem>>, vector<1x128xf32>
    %cst_18 = arith.constant 0.000000e+00 : f32
    %14 = vector.broadcast %cst_18 : f32 to vector<2x32xf32>
    %c0_i32 = arith.constant 0 : i32
    %c5_i32 = arith.constant 5 : i32
    %15 = arith.addi %c0_i32, %c5_i32 : i32
    %c1_i32 = arith.constant 1 : i32
    %16 = scf.for %arg12 = %c0_i32 to %15 step %c1_i32 iter_args(%arg13 = %14) -> (vector<2x32xf32>)  : i32 {
      %cst_20 = arith.constant dense<0.000000e+00> : vector<2x224xf32>
      %17 = tpu.matmul %arg13, %8, %cst_20 {dimension_numbers = #tpu.dot_dimension_numbers<[1], [0], [0], [1], [0, 0, 1, 1], [], []>} : vector<2x32xf32>, vector<32x224xf32>, vector<2x224xf32> -> vector<2x224xf32>
      %18 = vector.broadcast %9 : vector<1x224xf32> to vector<2x224xf32>
      %19 = arith.addf %17, %18 : vector<2x224xf32>
      %20 = vector.extract_strided_slice %19 {offsets = [0, 0], sizes = [2, 128], strides = [1, 1]} : vector<2x224xf32> to vector<2x128xf32>
      %21 = vector.extract_strided_slice %19 {offsets = [0, 128], sizes = [2, 96], strides = [1, 1]} : vector<2x224xf32> to vector<2x96xf32>
      %22 = vector.shape_cast %20 : vector<2x128xf32> to vector<2x1x128xf32>
      %23 = vector.broadcast %22 : vector<2x1x128xf32> to vector<2x8x128xf32>
      %24 = arith.addf %23, %7 : vector<2x8x128xf32>
      %25 = math.tanh %24 : vector<2x8x128xf32>
      %26 = vector.shape_cast %10 : vector<1x128xf32> to vector<1x1x128xf32>
      %27 = vector.broadcast %26 : vector<1x1x128xf32> to vector<2x8x128xf32>
      %28 = arith.mulf %25, %27 : vector<2x8x128xf32>
      %cst_21 = arith.constant dense<0.000000e+00> : vector<2x8xf32>
      %29 = vector.multi_reduction <add>, %28, %cst_21 [2] : vector<2x8x128xf32> to vector<2x8xf32>
      %cst_22 = arith.constant dense<0xFF800000> : vector<2xf32>
      %30 = vector.multi_reduction <maximumf>, %29, %cst_22 [1] : vector<2x8xf32> to vector<2xf32>
      %31 = vector.shape_cast %30 : vector<2xf32> to vector<2x1xf32>
      %32 = vector.broadcast %31 : vector<2x1xf32> to vector<2x8xf32>
      %33 = arith.subf %29, %32 : vector<2x8xf32>
      %34 = math.exp %33 : vector<2x8xf32>
      %cst_23 = arith.constant dense<0.000000e+00> : vector<2xf32>
      %35 = vector.multi_reduction <add>, %34, %cst_23 [1] : vector<2x8xf32> to vector<2xf32>
      %36 = vector.shape_cast %35 : vector<2xf32> to vector<2x1xf32>
      %37 = tpu.reciprocal %36 {approx = true} : vector<2x1xf32> -> vector<2x1xf32>
      %38 = vector.broadcast %37 : vector<2x1xf32> to vector<2x8xf32>
      %39 = arith.mulf %34, %38 : vector<2x8xf32>
      %40 = vector.shape_cast %39 : vector<2x8xf32> to vector<2x8x1xf32>
      %41 = vector.broadcast %40 : vector<2x8x1xf32> to vector<2x8x32xf32>
      %42 = arith.mulf %41, %0 : vector<2x8x32xf32>
      %cst_24 = arith.constant dense<0.000000e+00> : vector<2x32xf32>
      %43 = vector.multi_reduction <add>, %42, %cst_24 [1] : vector<2x8x32xf32> to vector<2x32xf32>
      %44 = arith.index_cast %arg12 : i32 to index
      %c0_25 = arith.constant 0 : index
      %c0_26 = arith.constant 0 : index
      %45 = vector.load %arg1[%44, %c0_25, %c0_26] : memref<5x2x96xf32, #tpu.memory_space<vmem>>, vector<1x2x96xf32>
      %46 = vector.shape_cast %45 : vector<1x2x96xf32> to vector<2x96xf32>
      %cst_27 = arith.constant dense<0.000000e+00> : vector<2x96xf32>
      %47 = tpu.matmul %43, %11, %cst_27 {dimension_numbers = #tpu.dot_dimension_numbers<[1], [0], [0], [1], [0, 0, 1, 1], [], []>} : vector<2x32xf32>, vector<32x96xf32>, vector<2x96xf32> -> vector<2x96xf32>
      %48 = arith.addf %46, %47 : vector<2x96xf32>
      %49 = vector.extract_strided_slice %48 {offsets = [0, 0], sizes = [2, 32], strides = [1, 1]} : vector<2x96xf32> to vector<2x32xf32>
      %50 = vector.extract_strided_slice %21 {offsets = [0, 0], sizes = [2, 32], strides = [1, 1]} : vector<2x96xf32> to vector<2x32xf32>
      %51 = arith.addf %49, %50 : vector<2x32xf32>
      %52 = arith.negf %51 : vector<2x32xf32>
      %53 = math.exp %52 : vector<2x32xf32>
      %cst_28 = arith.constant 1.000000e+00 : f32
      %54 = vector.broadcast %cst_28 : f32 to vector<2x32xf32>
      %55 = arith.addf %54, %53 : vector<2x32xf32>
      %56 = arith.divf %54, %55 : vector<2x32xf32>
      %57 = vector.extract_strided_slice %48 {offsets = [0, 32], sizes = [2, 32], strides = [1, 1]} : vector<2x96xf32> to vector<2x32xf32>
      %58 = vector.extract_strided_slice %21 {offsets = [0, 32], sizes = [2, 32], strides = [1, 1]} : vector<2x96xf32> to vector<2x32xf32>
      %59 = arith.addf %57, %58 : vector<2x32xf32>
      %60 = arith.negf %59 : vector<2x32xf32>
      %61 = math.exp %60 : vector<2x32xf32>
      %cst_29 = arith.constant 1.000000e+00 : f32
      %62 = vector.broadcast %cst_29 : f32 to vector<2x32xf32>
      %63 = arith.addf %62, %61 : vector<2x32xf32>
      %64 = arith.divf %62, %63 : vector<2x32xf32>
      %65 = vector.extract_strided_slice %48 {offsets = [0, 64], sizes = [2, 32], strides = [1, 1]} : vector<2x96xf32> to vector<2x32xf32>
      %66 = vector.extract_strided_slice %21 {offsets = [0, 64], sizes = [2, 32], strides = [1, 1]} : vector<2x96xf32> to vector<2x32xf32>
      %67 = arith.mulf %56, %66 : vector<2x32xf32>
      %68 = arith.addf %65, %67 : vector<2x32xf32>
      %69 = math.tanh %68 : vector<2x32xf32>
      %cst_30 = arith.constant 1.000000e+00 : f32
      %70 = vector.broadcast %cst_30 : f32 to vector<2x32xf32>
      %71 = arith.subf %70, %64 : vector<2x32xf32>
      %72 = arith.mulf %71, %69 : vector<2x32xf32>
      %73 = arith.mulf %64, %arg13 : vector<2x32xf32>
      %74 = arith.addf %72, %73 : vector<2x32xf32>
      %cst_31 = arith.constant dense<0.000000e+00> : vector<2x128xf32>
      %75 = tpu.matmul %74, %12, %cst_31 {dimension_numbers = #tpu.dot_dimension_numbers<[1], [0], [0], [1], [0, 0, 1, 1], [], []>} : vector<2x32xf32>, vector<32x128xf32>, vector<2x128xf32> -> vector<2x128xf32>
      %76 = vector.broadcast %13 : vector<1x128xf32> to vector<2x128xf32>
      %77 = arith.addf %75, %76 : vector<2x128xf32>
      %78 = arith.index_cast %arg12 : i32 to index
      %c0_32 = arith.constant 0 : index
      %c0_33 = arith.constant 0 : index
      %79 = vector.load %arg11[%78, %c0_32, %c0_33] : memref<5x2x128xf32, #tpu.memory_space<vmem>>, vector<1x2x128xf32>
      %80 = vector.shape_cast %79 : vector<1x2x128xf32> to vector<2x128xf32>
      %81 = vector.shape_cast %77 : vector<2x128xf32> to vector<1x2x128xf32>
      tpu.vector_store %arg11[%78, %c0_32, %c0_33], %81 {strides = array<i32>} : memref<5x2x128xf32, #tpu.memory_space<vmem>>, vector<1x2x128xf32>,
      scf.yield %74 : vector<2x32xf32>
    }
    %c5_i32_19 = arith.constant 5 : i32
    return
  }
  func.func @transform_0(%arg0: i32) -> (i32, i32, i32) {
    %c0_i32 = arith.constant 0 : i32
    %c0_i32_0 = arith.constant 0 : i32
    %c0_i32_1 = arith.constant 0 : i32
    return %c0_i32, %arg0, %c0_i32_0 : i32, i32, i32
  }
  func.func @transform_1(%arg0: i32) -> (i32, i32, i32) {
    %c0_i32 = arith.constant 0 : i32
    %c0_i32_0 = arith.constant 0 : i32
    %c0_i32_1 = arith.constant 0 : i32
    return %arg0, %c0_i32, %c0_i32_0 : i32, i32, i32
  }
  func.func @transform_2(%arg0: i32) -> (i32, i32) {
    %c0_i32 = arith.constant 0 : i32
    %c0_i32_0 = arith.constant 0 : i32
    %c0_i32_1 = arith.constant 0 : i32
    return %c0_i32, %c0_i32_0 : i32, i32
  }
  func.func @transform_3(%arg0: i32) -> (i32, i32) {
    %c0_i32 = arith.constant 0 : i32
    %c0_i32_0 = arith.constant 0 : i32
    %c0_i32_1 = arith.constant 0 : i32
    return %c0_i32, %c0_i32_0 : i32, i32
  }
  func.func @transform_4(%arg0: i32) -> (i32, i32) {
    %c0_i32 = arith.constant 0 : i32
    %c0_i32_0 = arith.constant 0 : i32
    %c0_i32_1 = arith.constant 0 : i32
    return %c0_i32, %c0_i32_0 : i32, i32
  }
  func.func @transform_5(%arg0: i32) -> (i32, i32) {
    %c0_i32 = arith.constant 0 : i32
    %c0_i32_0 = arith.constant 0 : i32
    %c0_i32_1 = arith.constant 0 : i32
    return %c0_i32, %c0_i32_0 : i32, i32
  }
  func.func @transform_6(%arg0: i32) -> (i32, i32) {
    %c0_i32 = arith.constant 0 : i32
    %c0_i32_0 = arith.constant 0 : i32
    %c0_i32_1 = arith.constant 0 : i32
    return %c0_i32, %c0_i32_0 : i32, i32
  }
  func.func @transform_7(%arg0: i32) -> (i32, i32) {
    %c0_i32 = arith.constant 0 : i32
    %c0_i32_0 = arith.constant 0 : i32
    %c0_i32_1 = arith.constant 0 : i32
    return %c0_i32, %c0_i32_0 : i32, i32
  }
  func.func @transform_8(%arg0: i32) -> (i32, i32) {
    %c0_i32 = arith.constant 0 : i32
    %c0_i32_0 = arith.constant 0 : i32
    %c0_i32_1 = arith.constant 0 : i32
    return %c0_i32, %c0_i32_0 : i32, i32
  }
  func.func @transform_9(%arg0: i32) -> (i32, i32) {
    %c0_i32 = arith.constant 0 : i32
    %c0_i32_0 = arith.constant 0 : i32
    %c0_i32_1 = arith.constant 0 : i32
    return %c0_i32, %c0_i32_0 : i32, i32
  }
  func.func @transform_10(%arg0: i32) -> (i32, i32, i32) {
    %c0_i32 = arith.constant 0 : i32
    %c0_i32_0 = arith.constant 0 : i32
    %c0_i32_1 = arith.constant 0 : i32
    return %c0_i32, %arg0, %c0_i32_0 : i32, i32, i32
  }
}

</mosaic_0001>

<llo_original>
// kernel: run.1
$region0: #{run.1}
  #allocation0 [shape = 'u32[]', space=smem, size = 0x4, offset = 0x4, fixed_abs, tag = 'smem constant byte address 0x4 - core index']
  #allocation1 [shape = 'u32[144,128]{1,0:T(1,128)}', space=vmem, size = 0x12000, scoped, tag = 'internal scratch']
  %s0 = inlined_call_operand.vmem [shape: f32[5,2,96], index: 0, kind: input, shape index: {}]
  %s1 = inlined_call_operand.vmem [shape: f32[2,8,32], index: 1, kind: input, shape index: {}]
  %s2 = inlined_call_operand.vmem [shape: f32[32,128], index: 2, kind: input, shape index: {}]
  %s3 = inlined_call_operand.vmem [shape: f32[1,128], index: 3, kind: input, shape index: {}]
  %s4 = inlined_call_operand.vmem [shape: f32[32,224], index: 4, kind: input, shape index: {}]
  %s5 = inlined_call_operand.vmem [shape: f32[1,224], index: 5, kind: input, shape index: {}]
  %s6 = inlined_call_operand.vmem [shape: f32[1,128], index: 6, kind: input, shape index: {}]
  %s7 = inlined_call_operand.vmem [shape: f32[32,96], index: 7, kind: input, shape index: {}]
  %s8 = inlined_call_operand.vmem [shape: f32[32,128], index: 8, kind: input, shape index: {}]
  %s9 = inlined_call_operand.vmem [shape: f32[1,128], index: 9, kind: input, shape index: {}]
  %s10 = inlined_call_operand.vmem [shape: f32[5,2,128], index: 10, kind: output, shape index: {}]
  %s11 = sld [smem:[#allocation0]]
  $region57: #{run.1} parent=0
    _
  %s13 = ssub.s32 1, %s11
  %s14 = scalar_select 0, %s13, %s11
  // Predicated region
  $region2: #{run.1} parent=0 // pred_check
    _
  $region3: #{run.1} parent=0 // pred_check_branch
    %16 = sbr.rel (0) target = $region5
  $region4: #{run.1} parent=0 // pred_region
    _
  $region5: #{run.1} parent=0 // pred_fallthru
    _
  // Predicated region
  $region6: #{run.1} parent=0 // pred_check
    _
  $region7: #{run.1} parent=0 // pred_check_branch
    %18 = sbr.rel (0) target = $region9
  $region8: #{run.1} parent=0 // pred_region
    _
  $region9: #{run.1} parent=0 // pred_fallthru
    _
  // Predicated region
  $region10: #{run.1} parent=0 // pred_check
    _
  $region11: #{run.1} parent=0 // pred_check_branch
    %20 = sbr.rel (0) target = $region13
  $region12: #{run.1} parent=0 // pred_region
    _
  $region13: #{run.1} parent=0 // pred_fallthru
    _
  // Predicated region
  $region14: #{run.1} parent=0 // pred_check
    _
  $region15: #{run.1} parent=0 // pred_check_branch
    %22 = sbr.rel (0) target = $region17
  $region16: #{run.1} parent=0 // pred_region
    _
  $region17: #{run.1} parent=0 // pred_fallthru
    _
  // Predicated region
  $region18: #{run.1} parent=0 // pred_check
    _
  $region19: #{run.1} parent=0 // pred_check_branch
    %24 = sbr.rel (0) target = $region21
  $region20: #{run.1} parent=0 // pred_region
    _
  $region21: #{run.1} parent=0 // pred_fallthru
    _
  // Predicated region
  $region22: #{run.1} parent=0 // pred_check
    _
  $region23: #{run.1} parent=0 // pred_check_branch
    %26 = sbr.rel (0) target = $region25
  $region24: #{run.1} parent=0 // pred_region
    _
  $region25: #{run.1} parent=0 // pred_fallthru
    _
  // Predicated region
  $region26: #{run.1} parent=0 // pred_check
    _
  $region27: #{run.1} parent=0 // pred_check_branch
    %28 = sbr.rel (0) target = $region29
  $region28: #{run.1} parent=0 // pred_region
    _
  $region29: #{run.1} parent=0 // pred_fallthru
    _
  // Predicated region
  $region30: #{run.1} parent=0 // pred_check
    _
  $region31: #{run.1} parent=0 // pred_check_branch
    %30 = sbr.rel (0) target = $region33
  $region32: #{run.1} parent=0 // pred_region
    _
  $region33: #{run.1} parent=0 // pred_fallthru
    _
  // Predicated region
  $region34: #{run.1} parent=0 // pred_check
    _
  $region35: #{run.1} parent=0 // pred_check_branch
    %32 = sbr.rel (0) target = $region37
  $region36: #{run.1} parent=0 // pred_region
    _
  $region37: #{run.1} parent=0 // pred_fallthru
    _
  // Predicated region
  $region38: #{run.1} parent=0 // pred_check
    _
  $region39: #{run.1} parent=0 // pred_check_branch
    %34 = sbr.rel (0) target = $region41
  $region40: #{run.1} parent=0 // pred_region
    _
  $region41: #{run.1} parent=0 // pred_fallthru
    _
  %v35 = vld [vmem:[%s1] sm:$0xff]
  %v36 = vld [vmem:[%s1 + $0x8] sm:$0xff]
  %v37 = vld [vmem:[%s2] sm:$0xff]
  %v38 = vld [vmem:[%s2 + $0x8] sm:$0xff]
  %v39 = vld [vmem:[%s2 + $0x10] sm:$0xff]
  %v40 = vld [vmem:[%s2 + $0x18] sm:$0xff]
  %v41 = vld [vmem:[%s3] sm:$0x1]
  %v43 = vlaneseq
  %v44 = vshrl.u32 %v43, 7
  %v45 = vsub.s32 0, %v44
  %v46 = vrot.slane %v41, %v45
  %vm48 = vcmask 261120
  %v50 = vsel %vm48, %v35, 0
  %v53 = vsel %vm48, %v36, 0
  %55 = vmatprep.subr.mxu0 0.0
  %56 = vmatpush1.msra.mxu0 %v37
  %57 = vmatprep.subr.mxu0 0.0
  %58 = vmatpush1.msra.mxu0 %v38
  %59 = vmatprep.subr.mxu0 0.0
  %60 = vmatpush1.msra.mxu0 %v39
  %61 = vmatprep.subr.mxu0 0.0
  %62 = vmatpush1.msra.mxu0 %v40
  %63 = vmatprep.subr.mxu0 0.0
  %64 = vmatpush1.msra.mxu0 0.0
  %65 = vmatprep.subr.mxu0 0.0
  %66 = vmatpush1.msra.mxu0 0.0
  %67 = vmatprep.subr.mxu0 0.0
  %68 = vmatpush1.msra.mxu0 0.0
  %69 = vmatprep.subr.mxu0 0.0
  %70 = vmatpush1.msra.mxu0 0.0
  %71 = vmatprep.subr.mxu0 0.0
  %72 = vmatpush1.msra.mxu0 0.0
  %73 = vmatprep.subr.mxu0 0.0
  %74 = vmatpush1.msra.mxu0 0.0
  %75 = vmatprep.subr.mxu0 0.0
  %76 = vmatpush1.msra.mxu0 0.0
  %77 = vmatprep.subr.mxu0 0.0
  %78 = vmatpush1.msra.mxu0 0.0
  %79 = vmatprep.subr.mxu0 0.0
  %80 = vmatpush1.msra.mxu0 0.0
  %81 = vmatprep.subr.mxu0 0.0
  %82 = vmatpush1.msra.mxu0 0.0
  %83 = vmatprep.subr.mxu0 0.0
  %84 = vmatpush1.msra.mxu0 0.0
  %85 = vmatprep.subr.mxu0 0.0
  %86 = vmatpush1.msra.mxu0 0.0
  %87 = vmatprep.subr.mxu0 0.0
  %88 = vmatpush1.msra.mxu0 0.0
  %89 = vmatprep.subr.mxu0 0.0
  %90 = vmatpush1.msra.mxu0 0.0
  %91 = vmatprep.subr.mxu0 0.0
  %92 = vmatpush1.msra.mxu0 0.0
  %93 = vmatprep.subr.mxu0 0.0
  %94 = vmatpush1.msra.mxu0 0.0
  %95 = vmatprep.subr.mxu0 0.0
  %96 = vmatpush1.msra.mxu0 0.0
  %97 = vmatprep.subr.mxu0 0.0
  %98 = vmatpush1.msra.mxu0 0.0
  %99 = vmatprep.subr.mxu0 0.0
  %100 = vmatpush1.msra.mxu0 0.0
  %101 = vmatprep.subr.mxu0 0.0
  %102 = vmatpush1.msra.mxu0 0.0
  %103 = vmatprep.subr.mxu0 0.0
  %104 = vmatpush1.msra.mxu0 0.0
  %105 = vmatprep.subr.mxu0 0.0
  %106 = vmatpush1.msra.mxu0 0.0
  %107 = vmatprep.subr.mxu0 0.0
  %108 = vmatpush1.msra.mxu0 0.0
  %109 = vmatprep.subr.mxu0 0.0
  %110 = vmatpush1.msra.mxu0 0.0
  %111 = vmatprep.subr.mxu0 0.0
  %112 = vmatpush1.msra.mxu0 0.0
  %113 = vmatprep.subr.mxu0 0.0
  %114 = vmatpush1.msra.mxu0 0.0
  %115 = vmatprep.subr.mxu0 0.0
  %116 = vmatpush1.msra.mxu0 0.0
  %117 = vmatprep.subr.mxu0 0.0
  %118 = vmatpush1.msra.mxu0 0.0
  %119 = vmatprep.mubr.f32.mxu0 0.0
  %120 = vmatmul.mubr.f32.gmra.mrb[0].mxu0 %v50
  %v121 = vpop.f32.mrb[0].mxu0
  %v122 = vadd.f32 %v46, %v121
  %v123 = vpop.f32.mrb[0].mxu0
  %124 = vmatprep.mubr.f32.mxu0 0.0
  %125 = vmatmul.mubr.f32.gmra.mrb[0].mxu0 %v53
  %v126 = vpop.f32.mrb[0].mxu0
  %v127 = vadd.f32 %v46, %v126
  %v128 = vpop.f32.mrb[0].mxu0
  %129 = vdwg.mxu0
  %v130 = vld [vmem:[%s4] sm:$0xff]
  %v131 = vld [vmem:[%s4 + $0x8] sm:$0xff]
  %v132 = vld [vmem:[%s4 + $0x10] sm:$0xff]
  %v133 = vld [vmem:[%s4 + $0x18] sm:$0xff]
  %v134 = vld [vmem:[%s4 + $0x20] sm:$0xff]
  %v135 = vld [vmem:[%s4 + $0x28] sm:$0xff]
  %v136 = vld [vmem:[%s4 + $0x30] sm:$0xff]
  %v137 = vld [vmem:[%s4 + $0x38] sm:$0xff]
  %v138 = vld [vmem:[%s5] sm:$0x3]
  %v139 = vld [vmem:[%s6] sm:$0x1]
  %v140 = vld [vmem:[%s7] sm:$0xff]
  %v141 = vld [vmem:[%s7 + $0x8] sm:$0xff]
  %v142 = vld [vmem:[%s7 + $0x10] sm:$0xff]
  %v143 = vld [vmem:[%s7 + $0x18] sm:$0xff]
  %v144 = vld [vmem:[%s8] sm:$0xff]
  %v145 = vld [vmem:[%s8 + $0x8] sm:$0xff]
  %v146 = vld [vmem:[%s8 + $0x10] sm:$0xff]
  %v147 = vld [vmem:[%s8 + $0x18] sm:$0xff]
  %v148 = vld [vmem:[%s9] sm:$0x1]
  loop: start=0, step=1, limit=5
  $region42: #{run.1} parent=0 // loop_pre_header
    _
  $region43: #{run.1} parent=0 // loop_header
    %s150 = sphi 0, %s154
    %p151 = scmp.ge.s32.totalorder %s150, 5
    %v155 = vphi 0.0, %v493
  $region44: #{run.1} parent=0 // loop_header_branch
    %153 = sbr.rel (%p151) target = $region48
  $region45: #{run.1} parent=0 // loop_body
    %v157 = vlaneseq
    %v158 = vshrl.u32 %v157, 7
    %v159 = vsub.s32 0, %v158
    %v160 = vrot.slane %v138, %v159
    %v161 = vlaneseq
    %v162 = vshrl.u32 %v161, 7
    %v163 = vsub.s32 1, %v162
    %v164 = vrot.slane %v138, %v163
    %168 = vrot.lane.b32.xlu0 %v155, 96
    %v169 = vpop.permute.xlu0 %168
    %v170 = vsel %vm48, %v169, 0
    %172 = vmatprep.subr.mxu0 %v131
    %173 = vmatpush1.msra.mxu0 %v130
    %174 = vmatprep.subr.mxu0 %v133
    %175 = vmatpush1.msra.mxu0 %v132
    %176 = vmatprep.subr.mxu0 %v135
    %177 = vmatpush1.msra.mxu0 %v134
    %178 = vmatprep.subr.mxu0 %v137
    %179 = vmatpush1.msra.mxu0 %v136
    %180 = vmatprep.subr.mxu0 0.0
    %181 = vmatpush1.msra.mxu0 0.0
    %182 = vmatprep.subr.mxu0 0.0
    %183 = vmatpush1.msra.mxu0 0.0
    %184 = vmatprep.subr.mxu0 0.0
    %185 = vmatpush1.msra.mxu0 0.0
    %186 = vmatprep.subr.mxu0 0.0
    %187 = vmatpush1.msra.mxu0 0.0
    %188 = vmatprep.subr.mxu0 0.0
    %189 = vmatpush1.msra.mxu0 0.0
    %190 = vmatprep.subr.mxu0 0.0
    %191 = vmatpush1.msra.mxu0 0.0
    %192 = vmatprep.subr.mxu0 0.0
    %193 = vmatpush1.msra.mxu0 0.0
    %194 = vmatprep.subr.mxu0 0.0
    %195 = vmatpush1.msra.mxu0 0.0
    %196 = vmatprep.subr.mxu0 0.0
    %197 = vmatpush1.msra.mxu0 0.0
    %198 = vmatprep.subr.mxu0 0.0
    %199 = vmatpush1.msra.mxu0 0.0
    %200 = vmatprep.subr.mxu0 0.0
    %201 = vmatpush1.msra.mxu0 0.0
    %202 = vmatprep.subr.mxu0 0.0
    %203 = vmatpush1.msra.mxu0 0.0
    %204 = vmatprep.subr.mxu0 0.0
    %205 = vmatpush1.msra.mxu0 0.0
    %206 = vmatprep.subr.mxu0 0.0
    %207 = vmatpush1.msra.mxu0 0.0
    %208 = vmatprep.subr.mxu0 0.0
    %209 = vmatpush1.msra.mxu0 0.0
    %210 = vmatprep.subr.mxu0 0.0
    %211 = vmatpush1.msra.mxu0 0.0
    %212 = vmatprep.subr.mxu0 0.0
    %213 = vmatpush1.msra.mxu0 0.0
    %214 = vmatprep.subr.mxu0 0.0
    %215 = vmatpush1.msra.mxu0 0.0
    %216 = vmatprep.subr.mxu0 0.0
    %217 = vmatpush1.msra.mxu0 0.0
    %218 = vmatprep.subr.mxu0 0.0
    %219 = vmatpush1.msra.mxu0 0.0
    %220 = vmatprep.subr.mxu0 0.0
    %221 = vmatpush1.msra.mxu0 0.0
    %222 = vmatprep.subr.mxu0 0.0
    %223 = vmatpush1.msra.mxu0 0.0
    %224 = vmatprep.subr.mxu0 0.0
    %225 = vmatpush1.msra.mxu0 0.0
    %226 = vmatprep.subr.mxu0 0.0
    %227 = vmatpush1.msra.mxu0 0.0
    %228 = vmatprep.subr.mxu0 0.0
    %229 = vmatpush1.msra.mxu0 0.0
    %230 = vmatprep.subr.mxu0 0.0
    %231 = vmatpush1.msra.mxu0 0.0
    %232 = vmatprep.subr.mxu0 0.0
    %233 = vmatpush1.msra.mxu0 0.0
    %234 = vmatprep.subr.mxu0 0.0
    %235 = vmatpush1.msra.mxu0 0.0
    %236 = vmatprep.mubr.f32.mxu0 0.0
    %237 = vmatmul.mubr.f32.gmra.mrb[0].mxu0 %v170
    %v238 = vpop.f32.mrb[0].mxu0
    %v239 = vadd.f32 %v160, %v238
    %v240 = vpop.f32.mrb[0].mxu0
    %v241 = vadd.f32 %v164, %v240
    %242 = vdwg.mxu0
    %v245 = vunpack.c.l.s4 1966171168
    %v246 = vunpack.c.0.s8 %v245
    %v247 = vlaneseq
    %v248 = vshrl.u32 %v247, 7
    %v249 = vsub.s32 %v246, %v248
    %v250 = vrot.slane %v239, %v249
    %v251 = vcombine.high %v250, %v250
    %v253 = vunpack.c.l.s4 1966171168
    %v254 = vunpack.c.0.s8 %v253
    %v255 = vlaneseq
    %v256 = vshrl.u32 %v255, 7
    %v257 = vsub.s32 %v254, %v256
    %v258 = vrot.slane %v250, %v257
    %v260 = vunpack.c.l.s4 1966171168
    %v261 = vunpack.c.0.s8 %v260
    %v262 = vlaneseq
    %v263 = vshrl.u32 %v262, 7
    %v264 = vsub.s32 %v261, %v263
    %v265 = vrot.slane %v251, %v264
    %v266 = vlaneseq
    %v267 = vshrl.u32 %v266, 7
    %v268 = vsub.s32 0, %v267
    %v269 = vrot.slane %v258, %v268
    %v270 = vlaneseq
    %v271 = vshrl.u32 %v270, 7
    %v272 = vsub.s32 0, %v271
    %v273 = vrot.slane %v265, %v272
    %v276 = vadd.f32 %v269, %v122
    %v277 = vadd.f32 %v273, %v127
    %v278 = vtanh.pop %v276
    %v279 = vtanh.pop %v277
    %v281 = vlaneseq
    %v282 = vshrl.u32 %v281, 7
    %v283 = vsub.s32 0, %v282
    %v284 = vrot.slane %v139, %v283
    %v286 = vmul.f32 %v278, %v284
    %v287 = vmul.f32 %v279, %v284
    %288 = vadd.xlane.f32.xlu0 %v286
    %v289 = vpop.xlane.xlu0 %288
    %290 = vadd.xlane.f32.xlu0 %v287
    %v291 = vpop.xlane.xlu0 %290
    %v294 = vlaneseq
    %v295 = vand.u32 %v294, 127
    %v296 = vlaneseq
    %v297 = vshrl.u32 %v296, 7
    %v298 = vsub.s32 %v295, %v297
    %v299 = vrot.slane %v289, %v298
    %v300 = vlaneseq
    %v301 = vshrl.u32 %v300, 7
    %v302 = vsub.s32 %v295, %v301
    %v303 = vrot.slane %v291, %v302
    %vm304 = vcmask 1041409
    %v305 = vsel %vm304, %v303, %v299
    %vm307 = vcmask 58368
    %v308 = vsel %vm307, %v305, -inf
    %309 = vmax.xlane.f32.xlu0 %v308
    %v310 = vpop.xlane.xlu0 %309
    %v312 = vlaneseq
    %v313 = vshrl.u32 %v312, 7
    %v314 = vsub.s32 0, %v313
    %v315 = vrot.slane %v310, %v314
    %v316 = vlaneseq
    %v317 = vshrl.u32 %v316, 7
    %v318 = vsub.s32 1, %v317
    %v319 = vrot.slane %v310, %v318
    %v322 = vsub.f32 %v289, %v315
    %v323 = vsub.f32 %v291, %v319
    %v324 = vmul.f32 %v322, 1.442695
    %v325 = vpow.pop %v324
    %v326 = vmul.f32 %v323, 1.442695
    %v327 = vpow.pop %v326
    %330 = vset.pattern.permute.xlu0 0
    %331 = vperm.xlu0 %330, %v325
    %v332 = vpop.permute.xlu0 %331
    %333 = vset.pattern.permute.xlu0 0
    %334 = vperm.xlu0 %333, %v327
    %v335 = vpop.permute.xlu0 %334
    %v336 = vlaneseq
    %v337 = vshrl.u32 %v336, 7
    %v338 = vsub.s32 %v295, %v337
    %v339 = vrot.slane %v332, %v338
    %v340 = vlaneseq
    %v341 = vshrl.u32 %v340, 7
    %v342 = vsub.s32 %v295, %v341
    %v343 = vrot.slane %v335, %v342
    %v344 = vsel %vm304, %v343, %v339
    %v346 = vsel %vm307, %v344, 0.0
    %347 = vadd.xlane.f32.xlu0 %v346
    %v348 = vpop.xlane.xlu0 %347
    %v349 = vrcp.pop %v348
    %v351 = vlaneseq
    %v352 = vshrl.u32 %v351, 7
    %v353 = vsub.s32 0, %v352
    %v354 = vrot.slane %v349, %v353
    %v355 = vlaneseq
    %v356 = vshrl.u32 %v355, 7
    %v357 = vsub.s32 1, %v356
    %v358 = vrot.slane %v349, %v357
    %v361 = vmul.f32 %v325, %v354
    %v362 = vmul.f32 %v327, %v358
    %364 = vset.pattern.permute.xlu0 0
    %365 = vperm.xlu0 %364, %v361
    %v366 = vpop.permute.xlu0 %365
    %369 = vset.pattern.permute.xlu0 0
    %370 = vperm.xlu0 %369, %v362
    %v371 = vpop.permute.xlu0 %370
    %v373 = vmul.f32 %v366, %v35
    %v374 = vmul.f32 %v371, %v36
    %v375 = vsel %vm48, %v373, 0.0
    %v376 = vrot.slane %v375, 4
    %v377 = vadd.f32 %v375, %v376
    %v378 = vrot.slane %v377, 2
    %v379 = vadd.f32 %v377, %v378
    %v380 = vrot.slane %v379, 1
    %v381 = vadd.f32 %v379, %v380
    %v382 = vsel %vm48, %v374, 0.0
    %v383 = vrot.slane %v382, 4
    %v384 = vadd.f32 %v382, %v383
    %v385 = vrot.slane %v384, 2
    %v386 = vadd.f32 %v384, %v385
    %v387 = vrot.slane %v386, 1
    %v388 = vadd.f32 %v386, %v387
    %s389 = smul.u32 %s150, 2
    %s390 = scalar_lea.vmem %s0, %s389
    %v391 = vld [vmem:[%s390] sm:$0x3]
    %v394 = vsel %vm304, %v388, %v381
    %v395 = vsel %vm48, %v394, 0
    %397 = vmatprep.subr.mxu0 0.0
    %398 = vmatpush1.msra.mxu0 %v140
    %399 = vmatprep.subr.mxu0 0.0
    %400 = vmatpush1.msra.mxu0 %v141
    %401 = vmatprep.subr.mxu0 0.0
    %402 = vmatpush1.msra.mxu0 %v142
    %403 = vmatprep.subr.mxu0 0.0
    %404 = vmatpush1.msra.mxu0 %v143
    %405 = vmatprep.subr.mxu0 0.0
    %406 = vmatpush1.msra.mxu0 0.0
    %407 = vmatprep.subr.mxu0 0.0
    %408 = vmatpush1.msra.mxu0 0.0
    %409 = vmatprep.subr.mxu0 0.0
    %410 = vmatpush1.msra.mxu0 0.0
    %411 = vmatprep.subr.mxu0 0.0
    %412 = vmatpush1.msra.mxu0 0.0
    %413 = vmatprep.subr.mxu0 0.0
    %414 = vmatpush1.msra.mxu0 0.0
    %415 = vmatprep.subr.mxu0 0.0
    %416 = vmatpush1.msra.mxu0 0.0
    %417 = vmatprep.subr.mxu0 0.0
    %418 = vmatpush1.msra.mxu0 0.0
    %419 = vmatprep.subr.mxu0 0.0
    %420 = vmatpush1.msra.mxu0 0.0
    %421 = vmatprep.subr.mxu0 0.0
    %422 = vmatpush1.msra.mxu0 0.0
    %423 = vmatprep.subr.mxu0 0.0
    %424 = vmatpush1.msra.mxu0 0.0
    %425 = vmatprep.subr.mxu0 0.0
    %426 = vmatpush1.msra.mxu0 0.0
    %427 = vmatprep.subr.mxu0 0.0
    %428 = vmatpush1.msra.mxu0 0.0
    %429 = vmatprep.subr.mxu0 0.0
    %430 = vmatpush1.msra.mxu0 0.0
    %431 = vmatprep.subr.mxu0 0.0
    %432 = vmatpush1.msra.mxu0 0.0
    %433 = vmatprep.subr.mxu0 0.0
    %434 = vmatpush1.msra.mxu0 0.0
    %435 = vmatprep.subr.mxu0 0.0
    %436 = vmatpush1.msra.mxu0 0.0
    %437 = vmatprep.subr.mxu0 0.0
    %438 = vmatpush1.msra.mxu0 0.0
    %439 = vmatprep.subr.mxu0 0.0
    %440 = vmatpush1.msra.mxu0 0.0
    %441 = vmatprep.subr.mxu0 0.0
    %442 = vmatpush1.msra.mxu0 0.0
    %443 = vmatprep.subr.mxu0 0.0
    %444 = vmatpush1.msra.mxu0 0.0
    %445 = vmatprep.subr.mxu0 0.0
    %446 = vmatpush1.msra.mxu0 0.0
    %447 = vmatprep.subr.mxu0 0.0
    %448 = vmatpush1.msra.mxu0 0.0
    %449 = vmatprep.subr.mxu0 0.0
    %450 = vmatpush1.msra.mxu0 0.0
    %451 = vmatprep.subr.mxu0 0.0
    %452 = vmatpush1.msra.mxu0 0.0
    %453 = vmatprep.subr.mxu0 0.0
    %454 = vmatpush1.msra.mxu0 0.0
    %455 = vmatprep.subr.mxu0 0.0
    %456 = vmatpush1.msra.mxu0 0.0
    %457 = vmatprep.subr.mxu0 0.0
    %458 = vmatpush1.msra.mxu0 0.0
    %459 = vmatprep.subr.mxu0 0.0
    %460 = vmatpush1.msra.mxu0 0.0
    %461 = vmatprep.mubr.f32.mxu0 0.0
    %462 = vmatmul.mubr.f32.gmra.mrb[0].mxu0 %v395
    %v463 = vpop.f32.mrb[0].mxu0
    %v464 = vadd.f32 0.0, %v463
    %v465 = vpop.f32.mrb[0].mxu0
    %466 = vdwg.mxu0
    %v467 = vadd.f32 %v391, %v464
    %v468 = vadd.f32 %v467, %v241
    %v469 = vxor.u32 %v468, 2147483648
    %v470 = vmul.f32 %v469, 1.442695
    %v471 = vpow.pop %v470
    %v472 = vadd.f32 %v471, 1.0
    %v473 = vrcp.pop %v472
    %v474 = vmul.f32 1.0, %v473
    %476 = vrot.lane.b32.xlu0 %v241, 64
    %v477 = vpop.permute.xlu0 %476
    %v479 = vmul.f32 %v474, %v477
    %481 = vrot.lane.b32.xlu0 %v479, 64
    %v482 = vpop.permute.xlu0 %481
    %v484 = vadd.f32 %v467, %v482
    %v485 = vtanh.pop %v484
    %v486 = vsub.f32 1.0, %v474
    %488 = vrot.lane.b32.xlu0 %v485, 96
    %v489 = vpop.permute.xlu0 %488
    %v491 = vmul.f32 %v486, %v489
    %v492 = vmul.f32 %v474, %v155
    %v493 = vadd.f32 %v491, %v492
    %v495 = vlaneseq
    %v496 = vshrl.u32 %v495, 7
    %v497 = vsub.s32 0, %v496
    %v498 = vrot.slane %v148, %v497
    %501 = vrot.lane.b32.xlu0 %v493, 96
    %v502 = vpop.permute.xlu0 %501
    %v503 = vsel %vm48, %v502, 0
    %505 = vmatprep.subr.mxu0 0.0
    %506 = vmatpush1.msra.mxu0 %v144
    %507 = vmatprep.subr.mxu0 0.0
    %508 = vmatpush1.msra.mxu0 %v145
    %509 = vmatprep.subr.mxu0 0.0
    %510 = vmatpush1.msra.mxu0 %v146
    %511 = vmatprep.subr.mxu0 0.0
    %512 = vmatpush1.msra.mxu0 %v147
    %513 = vmatprep.subr.mxu0 0.0
    %514 = vmatpush1.msra.mxu0 0.0
    %515 = vmatprep.subr.mxu0 0.0
    %516 = vmatpush1.msra.mxu0 0.0
    %517 = vmatprep.subr.mxu0 0.0
    %518 = vmatpush1.msra.mxu0 0.0
    %519 = vmatprep.subr.mxu0 0.0
    %520 = vmatpush1.msra.mxu0 0.0
    %521 = vmatprep.subr.mxu0 0.0
    %522 = vmatpush1.msra.mxu0 0.0
    %523 = vmatprep.subr.mxu0 0.0
    %524 = vmatpush1.msra.mxu0 0.0
    %525 = vmatprep.subr.mxu0 0.0
    %526 = vmatpush1.msra.mxu0 0.0
    %527 = vmatprep.subr.mxu0 0.0
    %528 = vmatpush1.msra.mxu0 0.0
    %529 = vmatprep.subr.mxu0 0.0
    %530 = vmatpush1.msra.mxu0 0.0
    %531 = vmatprep.subr.mxu0 0.0
    %532 = vmatpush1.msra.mxu0 0.0
    %533 = vmatprep.subr.mxu0 0.0
    %534 = vmatpush1.msra.mxu0 0.0
    %535 = vmatprep.subr.mxu0 0.0
    %536 = vmatpush1.msra.mxu0 0.0
    %537 = vmatprep.subr.mxu0 0.0
    %538 = vmatpush1.msra.mxu0 0.0
    %539 = vmatprep.subr.mxu0 0.0
    %540 = vmatpush1.msra.mxu0 0.0
    %541 = vmatprep.subr.mxu0 0.0
    %542 = vmatpush1.msra.mxu0 0.0
    %543 = vmatprep.subr.mxu0 0.0
    %544 = vmatpush1.msra.mxu0 0.0
    %545 = vmatprep.subr.mxu0 0.0
    %546 = vmatpush1.msra.mxu0 0.0
    %547 = vmatprep.subr.mxu0 0.0
    %548 = vmatpush1.msra.mxu0 0.0
    %549 = vmatprep.subr.mxu0 0.0
    %550 = vmatpush1.msra.mxu0 0.0
    %551 = vmatprep.subr.mxu0 0.0
    %552 = vmatpush1.msra.mxu0 0.0
    %553 = vmatprep.subr.mxu0 0.0
    %554 = vmatpush1.msra.mxu0 0.0
    %555 = vmatprep.subr.mxu0 0.0
    %556 = vmatpush1.msra.mxu0 0.0
    %557 = vmatprep.subr.mxu0 0.0
    %558 = vmatpush1.msra.mxu0 0.0
    %559 = vmatprep.subr.mxu0 0.0
    %560 = vmatpush1.msra.mxu0 0.0
    %561 = vmatprep.subr.mxu0 0.0
    %562 = vmatpush1.msra.mxu0 0.0
    %563 = vmatprep.subr.mxu0 0.0
    %564 = vmatpush1.msra.mxu0 0.0
    %565 = vmatprep.subr.mxu0 0.0
    %566 = vmatpush1.msra.mxu0 0.0
    %567 = vmatprep.subr.mxu0 0.0
    %568 = vmatpush1.msra.mxu0 0.0
    %569 = vmatprep.mubr.f32.mxu0 0.0
    %570 = vmatmul.mubr.f32.gmra.mrb[0].mxu0 %v503
    %v571 = vpop.f32.mrb[0].mxu0
    %v572 = vadd.f32 %v498, %v571
    %v573 = vpop.f32.mrb[0].mxu0
    %574 = vdwg.mxu0
    %s575 = scalar_lea.vmem %s10, %s389
    %576 = vst [vmem:[%s575] sm:$0x3] %v572
  $region46: #{run.1} parent=0 // loop_footer
    %s154 = sadd.s32 1, %s150
  $region47: #{run.1} parent=0 // loop_footer_branch
    %149 = sbr.rel target = $region43
  $region48: #{run.1} parent=0 // loop_exit
    _
  // Predicated region
  $region49: #{run.1} parent=0 // pred_check
    _
  $region50: #{run.1} parent=0 // pred_check_branch
    %578 = sbr.rel (0) target = $region52
  $region51: #{run.1} parent=0 // pred_region
    _
  $region52: #{run.1} parent=0 // pred_fallthru
    _
  // Predicated region
  $region53: #{run.1} parent=0 // pred_check
    _
  $region54: #{run.1} parent=0 // pred_check_branch
    %580 = sbr.rel (0) target = $region56
  $region55: #{run.1} parent=0 // pred_region
    _
  $region56: #{run.1} parent=0 // pred_fallthru
    _

</llo_original>
